<compile_context>
chip_gen: v7x
topology: tpu7x:2x2x1
jax: 0.10.0
libtpu: 0.0.40
codegen_flags: <defaults>
</compile_context>

<pallas_src>
import functools

import jax
import jax.numpy as jnp
from jax.experimental import pallas as pl
from jax.experimental.pallas import tpu as pltpu


def _adain_kernel(x_ref, y_ref, o_ref, *, eps, n_spatial):
    # x_ref / y_ref / o_ref: (tile_rows, H*W) — one row per (batch, channel).
    x = x_ref[...].astype(jnp.float32)
    y = y_ref[...].astype(jnp.float32)

    inv_n = 1.0 / n_spatial
    inv_nm1 = 1.0 / (n_spatial - 1.0)  # torch.var default: unbiased (N-1)

    # Single-pass statistics (fp32 accumulation).
    x_sum = jnp.sum(x, axis=-1, keepdims=True)
    x_sumsq = jnp.sum(x * x, axis=-1, keepdims=True)
    y_sum = jnp.sum(y, axis=-1, keepdims=True)
    y_sumsq = jnp.sum(y * y, axis=-1, keepdims=True)

    x_mean = x_sum * inv_n
    y_mean = y_sum * inv_n
    x_var = (x_sumsq - n_spatial * x_mean * x_mean) * inv_nm1
    y_var = (y_sumsq - n_spatial * y_mean * y_mean) * inv_nm1

    # Per-row scale/bias; the per-element work is a single FMA + cast.
    scale = y_var / (x_var + eps)          # (tile_rows, 1)
    bias = y_mean - scale * x_mean         # (tile_rows, 1)

    o_ref[...] = (x * scale + bias).astype(o_ref.dtype)


def _round_up(a, b):
    return ((a + b - 1) // b) * b


def _vmem_capacity_bytes():
    try:
        return int(pltpu.get_tpu_info().vmem_capacity_bytes)
    except Exception:
        return 64 << 20  # conservative (v7x-like) default


def ada_instance_norm(x, y, eps=1e-6, tile_rows=None):
    """x, y: (B, C, H, W) arrays with matching shapes. Returns same shape."""
    assert x.shape == y.shape, "x and y must share (B, C, H, W) shape"
    B, C, H, W = x.shape
    BC, HW = B * C, H * W
    assert HW > 1, "unbiased variance needs at least 2 spatial elements"

    # Free reshapes (contiguous), no HBM copy.
    x2 = x.reshape(BC, HW)
    y2 = y.reshape(BC, HW)

    itemsize = jnp.dtype(x.dtype).itemsize
    # Dtype-aware sublane multiple so packed dtypes fill their native tile.
    sub = {4: 8, 2: 16, 1: 32}.get(itemsize, 8)

    vmem_cap = _vmem_capacity_bytes()
    big_vmem = vmem_cap >= (96 << 20)               # v5e / v6e: 128 MiB per TC
    target_block_bytes = (8 << 20) if big_vmem else (4 << 20)
    vmem_budget = (96 << 20) if big_vmem else (48 << 20)
    row_cap = 2048

    bc_rounded = max(sub, _round_up(BC, sub))

    def vmem_need(rows):
        # 3 arrays x 2 pipeline buffers (input dtype) + ~4 fp32 block temps
        # (x, y casts, x*x / fused-output) + slack.
        return 6 * rows * HW * itemsize + 4 * rows * HW * 4 + (2 << 20)

    if tile_rows is None:
        tr = target_block_bytes // max(HW * itemsize, 1)
        tr = max(sub, (tr // sub) * sub)
        tr = min(tr, row_cap)
        tr = min(tr, bc_rounded)
        # Keep ~8 grid steps when possible so v7x's 2 TensorCores both get work.
        tr = min(tr, max(sub, _round_up(pl.cdiv(BC, 8), sub)))
        # Shrink until the pipeline working set fits the scoped-VMEM budget.
        while tr > sub and vmem_need(tr) > vmem_budget:
            tr = max(sub, ((tr // 2) // sub) * sub)
        tile_rows = tr

    block_bytes = tile_rows * HW * itemsize
    vmem_limit = int(min(vmem_budget, max(32 << 20, vmem_need(tile_rows))))

    # Partial last block (tile_rows not dividing BC) is fine: rows are
    # independent, out-of-bounds input reads are garbage but the corresponding
    # output stores are masked away by Pallas.
    grid = (pl.cdiv(BC, tile_rows),)

    # NOTE: HW is the full last dim, so the BlockSpec is legal even when HW is
    # not a multiple of 128 (lane-dense stores only when HW % 128 == 0).
    # TODO(synk): for HW < 128 (e.g. 7x7 / 8x8 maps), pack multiple instances
    # per vreg row (or transpose to (HW, BC)) to fill the 128-lane axis.
    # TODO(synk): for very large HW (e.g. >= 512x512 f32 on v7x's 64 MiB VMEM),
    # add a second 'arbitrary' grid axis over spatial chunks with scratch
    # accumulators + a second normalization sweep.
    spec = pl.BlockSpec((tile_rows, HW), lambda i: (i, 0))

    cost = pl.CostEstimate(
        flops=10 * BC * HW,
        transcendentals=0,
        bytes_accessed=3 * BC * HW * itemsize,
    )

    out2 = pl.pallas_call(
        functools.partial(_adain_kernel, eps=float(eps), n_spatial=float(HW)),
        out_shape=jax.ShapeDtypeStruct((BC, HW), x.dtype),
        grid_spec=pltpu.PrefetchScalarGridSpec(
            num_scalar_prefetch=0,
            grid=grid,
            in_specs=[spec, spec],
            out_specs=spec,
        ),
        compiler_params=pltpu.CompilerParams(
            dimension_semantics=("parallel",),
            vmem_limit_bytes=vmem_limit,
        ),
        cost_estimate=cost,
    )(x2, y2)

    del block_bytes  # (sized into vmem_limit above)
    return out2.reshape(B, C, H, W)


def _reference(x, y, eps=1e-6):
    B, C, H, W = x.shape
    xv = x.reshape(B, C, H * W).astype(jnp.float32)
    yv = y.reshape(B, C, H * W).astype(jnp.float32)
    x_mean = xv.mean(-1)[..., None, None]
    y_mean = yv.mean(-1)[..., None, None]
    x_var = xv.var(-1, ddof=1)[..., None, None]
    y_var = yv.var(-1, ddof=1)[..., None, None]
    out = y_var * (x.astype(jnp.float32) - x_mean) / (x_var + eps) + y_mean
    return out.astype(x.dtype)


if __name__ == "__main__":
    key = jax.random.PRNGKey(0)
    kx, ky, kx2, ky2 = jax.random.split(key, 4)

    # Test 1: small NCHW input, evenly divisible grid.
    B, C, H, W = 2, 4, 16, 16
    x = jax.random.normal(kx, (B, C, H, W), dtype=jnp.float32)
    y = jax.random.normal(ky, (B, C, H, W), dtype=jnp.float32) * 2.0 + 0.5

    out = ada_instance_norm(x, y, eps=1e-6)
    out = jax.block_until_ready(out)
    ref = _reference(x, y, eps=1e-6)
    assert out.shape == (B, C, H, W)
    assert jnp.allclose(out, ref, atol=1e-3, rtol=1e-3), "mismatch vs reference"

    # Test 2: B*C not a multiple of tile_rows -> exercises the masked
    # partial-last-block path.
    B2, C2, H2, W2 = 3, 5, 16, 16
    xp = jax.random.normal(kx2, (B2, C2, H2, W2), dtype=jnp.float32)
    yp = jax.random.normal(ky2, (B2, C2, H2, W2), dtype=jnp.float32) * 1.5 + 0.3

    outp = ada_instance_norm(xp, yp, eps=1e-6, tile_rows=8)
    outp = jax.block_until_ready(outp)
    refp = _reference(xp, yp, eps=1e-6)
    assert outp.shape == (B2, C2, H2, W2)
    assert jnp.allclose(outp, refp, atol=1e-3, rtol=1e-3), "partial-block mismatch"

    print("KERNEL_OK")
</pallas_src>

<mosaic_0001>
module attributes {stable_mosaic.version = 11 : i64} {
  func.func @_adain_kernel(%arg0: i32, %arg1: memref<8x256xf32, #tpu.memory_space<vmem>>, %arg2: memref<8x256xf32, #tpu.memory_space<vmem>>, %arg3: memref<8x256xf32, #tpu.memory_space<vmem>>) attributes {dimension_semantics = [#tpu.dimension_semantics<parallel>], iteration_bounds = array<i64: 1>, scalar_prefetch = 0 : i64, scratch_operands = 0 : i64, tpu.core_type = #tpu.core_type<tc>, window_params = [{transform_indices = @transform_0, window_bounds = array<i64: 8, 256>}, {transform_indices = @transform_1, window_bounds = array<i64: 8, 256>}, {transform_indices = @transform_2, window_bounds = array<i64: 8, 256>}]} {
    %c0 = arith.constant 0 : index
    %c0_0 = arith.constant 0 : index
    %0 = vector.load %arg1[%c0, %c0_0] : memref<8x256xf32, #tpu.memory_space<vmem>>, vector<8x256xf32>
    %c0_1 = arith.constant 0 : index
    %c0_2 = arith.constant 0 : index
    %1 = vector.load %arg2[%c0_1, %c0_2] : memref<8x256xf32, #tpu.memory_space<vmem>>, vector<8x256xf32>
    %cst = arith.constant dense<0.000000e+00> : vector<8xf32>
    %2 = vector.multi_reduction <add>, %0, %cst [1] : vector<8x256xf32> to vector<8xf32>
    %3 = vector.shape_cast %2 : vector<8xf32> to vector<8x1xf32>
    %4 = arith.mulf %0, %0 : vector<8x256xf32>
    %cst_3 = arith.constant dense<0.000000e+00> : vector<8xf32>
    %5 = vector.multi_reduction <add>, %4, %cst_3 [1] : vector<8x256xf32> to vector<8xf32>
    %6 = vector.shape_cast %5 : vector<8xf32> to vector<8x1xf32>
    %cst_4 = arith.constant dense<0.000000e+00> : vector<8xf32>
    %7 = vector.multi_reduction <add>, %1, %cst_4 [1] : vector<8x256xf32> to vector<8xf32>
    %8 = vector.shape_cast %7 : vector<8xf32> to vector<8x1xf32>
    %9 = arith.mulf %1, %1 : vector<8x256xf32>
    %cst_5 = arith.constant dense<0.000000e+00> : vector<8xf32>
    %10 = vector.multi_reduction <add>, %9, %cst_5 [1] : vector<8x256xf32> to vector<8xf32>
    %11 = vector.shape_cast %10 : vector<8xf32> to vector<8x1xf32>
    %cst_6 = arith.constant 3.906250e-03 : f32
    %12 = vector.broadcast %cst_6 : f32 to vector<8x1xf32>
    %13 = arith.mulf %3, %12 : vector<8x1xf32>
    %cst_7 = arith.constant 3.906250e-03 : f32
    %14 = vector.broadcast %cst_7 : f32 to vector<8x1xf32>
    %15 = arith.mulf %8, %14 : vector<8x1xf32>
    %cst_8 = arith.constant 2.560000e+02 : f32
    %16 = vector.broadcast %cst_8 : f32 to vector<8x1xf32>
    %17 = arith.mulf %16, %13 : vector<8x1xf32>
    %18 = arith.mulf %17, %13 : vector<8x1xf32>
    %19 = arith.subf %6, %18 : vector<8x1xf32>
    %cst_9 = arith.constant 0.00392156886 : f32
    %20 = vector.broadcast %cst_9 : f32 to vector<8x1xf32>
    %21 = arith.mulf %19, %20 : vector<8x1xf32>
    %cst_10 = arith.constant 2.560000e+02 : f32
    %22 = vector.broadcast %cst_10 : f32 to vector<8x1xf32>
    %23 = arith.mulf %22, %15 : vector<8x1xf32>
    %24 = arith.mulf %23, %15 : vector<8x1xf32>
    %25 = arith.subf %11, %24 : vector<8x1xf32>
    %cst_11 = arith.constant 0.00392156886 : f32
    %26 = vector.broadcast %cst_11 : f32 to vector<8x1xf32>
    %27 = arith.mulf %25, %26 : vector<8x1xf32>
    %cst_12 = arith.constant 9.99999997E-7 : f32
    %28 = vector.broadcast %cst_12 : f32 to vector<8x1xf32>
    %29 = arith.addf %21, %28 : vector<8x1xf32>
    %30 = arith.divf %27, %29 : vector<8x1xf32>
    %31 = arith.mulf %30, %13 : vector<8x1xf32>
    %32 = arith.subf %15, %31 : vector<8x1xf32>
    %33 = vector.broadcast %30 : vector<8x1xf32> to vector<8x256xf32>
    %34 = arith.mulf %0, %33 : vector<8x256xf32>
    %35 = vector.broadcast %32 : vector<8x1xf32> to vector<8x256xf32>
    %36 = arith.addf %34, %35 : vector<8x256xf32>
    %c0_13 = arith.constant 0 : index
    %c0_14 = arith.constant 0 : index
    %37 = vector.load %arg3[%c0_13, %c0_14] : memref<8x256xf32, #tpu.memory_space<vmem>>, vector<8x256xf32>
    tpu.vector_store %arg3[%c0_13, %c0_14], %36 {strides = array<i32>} : memref<8x256xf32, #tpu.memory_space<vmem>>, vector<8x256xf32>,
    return
  }
  func.func @transform_0(%arg0: i32) -> (i32, i32) {
    %c0_i32 = arith.constant 0 : i32
    %c0_i32_0 = arith.constant 0 : i32
    return %arg0, %c0_i32 : i32, i32
  }
  func.func @transform_1(%arg0: i32) -> (i32, i32) {
    %c0_i32 = arith.constant 0 : i32
    %c0_i32_0 = arith.constant 0 : i32
    return %arg0, %c0_i32 : i32, i32
  }
  func.func @transform_2(%arg0: i32) -> (i32, i32) {
    %c0_i32 = arith.constant 0 : i32
    %c0_i32_0 = arith.constant 0 : i32
    return %arg0, %c0_i32 : i32, i32
  }
}

</mosaic_0001>

<llo_original>
// kernel: tpu_custom_call.1
$region0: #{tpu_custom_call.1}
  #allocation0 [shape = 'u32[]', space=smem, size = 0x4, offset = 0x4, fixed_abs, tag = 'smem constant byte address 0x4 - core index']
  #allocation1 [shape = 'u32[144,128]{1,0:T(1,128)}', space=vmem, size = 0x12000, scoped, tag = 'internal scratch']
  %s0 = inlined_call_operand.hbm [shape: f32[8,256], index: 0, kind: input, shape index: {}]
  %s1 = inlined_call_operand.hbm [shape: f32[8,256], index: 1, kind: input, shape index: {}]
  %s2 = inlined_call_operand.hbm [shape: f32[8,256], index: 2, kind: output, shape index: {}]
  %s3 = sld [smem:[#allocation0]]
  $region26: #{tpu_custom_call.1} parent=0
    _
  %s5 = ssub.s32 1, %s3
  %s6 = scalar_select 0, %s5, %s3
  $region1: #{tpu_custom_call.1} parent=0
    #allocation2 [shape = 'u8[8192]{0}', space=vmem, size = 0x2000, scoped, tag = 'input window, operand 0, single buffered']
    #allocation3 [shape = 's32[1]{0}', space=sflag, size = 0x4, scoped, tag = 'scoped memory for tpu_custom_call.1']
    #allocation4 [shape = 's32[1]{0}', space=sflag, size = 0x4, scoped, tag = 'scoped memory for tpu_custom_call.1']
    #allocation5 [shape = 'u8[8192]{0}', space=vmem, size = 0x2000, scoped, tag = 'input window, operand 1, single buffered']
    #allocation6 [shape = 's32[1]{0}', space=sflag, size = 0x4, scoped, tag = 'scoped memory for tpu_custom_call.1']
    #allocation7 [shape = 'u8[8192]{0}', space=vmem, size = 0x2000, scoped, tag = 'output window, operand 0, single buffered']
    %7 = vsyncpa [#allocation3], 0
    %8 = vsyncpa [#allocation6], 0
    %9 = vsyncpa [#allocation4], 0
    // Predicated region
    $region2: #{tpu_custom_call.1} parent=1 // pred_check
      _
    $region3: #{tpu_custom_call.1} parent=1 // pred_check_branch
      %11 = sbr.rel (0) target = $region5
    $region4: #{tpu_custom_call.1} parent=1 // pred_region
      %s13 = ssub.s32 256, 256
      %14 = vsyncadd [#allocation3], %s13
      %s16 = sshll.u32 [#allocation2], 4
      %s17 = int_to_ptr.vmem [resolvable:$true] %s16
      %19 = dma.hbm_to_vmem [thread:$0]  %s0, 256, %s17, [#allocation3]
    $region5: #{tpu_custom_call.1} parent=1 // pred_fallthru
      _
    // Predicated region
    $region6: #{tpu_custom_call.1} parent=1 // pred_check
      _
    $region7: #{tpu_custom_call.1} parent=1 // pred_check_branch
      %21 = sbr.rel (0) target = $region9
    $region8: #{tpu_custom_call.1} parent=1 // pred_region
      %s23 = ssub.s32 256, 256
      %24 = vsyncadd [#allocation6], %s23
      %s26 = sshll.u32 [#allocation5], 4
      %s27 = int_to_ptr.vmem [resolvable:$true] %s26
      %29 = dma.hbm_to_vmem [thread:$0]  %s1, 256, %s27, [#allocation6]
    $region9: #{tpu_custom_call.1} parent=1 // pred_fallthru
      _
    // Predicated region
    $region10: #{tpu_custom_call.1} parent=1 // pred_check
      _
    $region11: #{tpu_custom_call.1} parent=1 // pred_check_branch
      %31 = sbr.rel (0) target = $region13
    $region12: #{tpu_custom_call.1} parent=1 // pred_region
      %32 = dma.done [#allocation3], 256
    $region13: #{tpu_custom_call.1} parent=1 // pred_fallthru
      _
    // Predicated region
    $region14: #{tpu_custom_call.1} parent=1 // pred_check
      _
    $region15: #{tpu_custom_call.1} parent=1 // pred_check_branch
      %34 = sbr.rel (0) target = $region17
    $region16: #{tpu_custom_call.1} parent=1 // pred_region
      %35 = dma.done [#allocation6], 256
    $region17: #{tpu_custom_call.1} parent=1 // pred_fallthru
      _
    %v36 = vld [vmem:[#allocation2] sm:$0xff]
    %v37 = vld [vmem:[#allocation2 + $0x8] sm:$0xff]
    %v38 = vld [vmem:[#allocation5] sm:$0xff]
    %v39 = vld [vmem:[#allocation5 + $0x8] sm:$0xff]
    %v40 = vadd.f32 %v36, %v37
    %41 = vadd.xlane.f32.xlu0 %v40
    %v42 = vpop.xlane.xlu0 %41
    %v43 = vmul.f32 %v36, %v36
    %v44 = vmul.f32 %v37, %v37
    %v45 = vadd.f32 %v43, %v44
    %46 = vadd.xlane.f32.xlu0 %v45
    %v47 = vpop.xlane.xlu0 %46
    %v48 = vadd.f32 %v38, %v39
    %49 = vadd.xlane.f32.xlu0 %v48
    %v50 = vpop.xlane.xlu0 %49
    %v51 = vmul.f32 %v38, %v38
    %v52 = vmul.f32 %v39, %v39
    %v53 = vadd.f32 %v51, %v52
    %54 = vadd.xlane.f32.xlu0 %v53
    %v55 = vpop.xlane.xlu0 %54
    %v56 = vmul.f32 %v42, 0.00390625
    %v57 = vmul.f32 %v50, 0.00390625
    %v58 = vmul.f32 %v56, 256.0
    %v59 = vmul.f32 %v58, %v56
    %v60 = vsub.f32 %v47, %v59
    %v61 = vmul.f32 %v60, 0.003921569
    %v62 = vmul.f32 %v57, 256.0
    %v63 = vmul.f32 %v62, %v57
    %v64 = vsub.f32 %v55, %v63
    %v65 = vmul.f32 %v64, 0.003921569
    %v66 = vadd.f32 %v61, 1e-06
    %v67 = vrcp.pop %v66
    %v68 = vmul.f32 %v65, %v67
    %v69 = vmul.f32 %v68, %v56
    %v70 = vsub.f32 %v57, %v69
    %v71 = vmul.f32 %v36, %v68
    %v72 = vmul.f32 %v37, %v68
    %v73 = vadd.f32 %v71, %v70
    %v74 = vadd.f32 %v72, %v70
    %75 = vst [vmem:[#allocation7] sm:$0xff] %v73
    %76 = vst [vmem:[#allocation7 + $0x8] sm:$0xff] %v74
    // Predicated region
    $region18: #{tpu_custom_call.1} parent=1 // pred_check
      _
    $region19: #{tpu_custom_call.1} parent=1 // pred_check_branch
      %78 = sbr.rel (0) target = $region21
    $region20: #{tpu_custom_call.1} parent=1 // pred_region
      %s80 = ssub.s32 256, 256
      %81 = vsyncadd [#allocation4], %s80
      %s83 = sshll.u32 [#allocation7], 4
      %s84 = int_to_ptr.vmem [resolvable:$true] %s83
      %86 = dma.vmem_to_hbm [thread:$0]  %s84, 256, %s2, [#allocation4]
    $region21: #{tpu_custom_call.1} parent=1 // pred_fallthru
      _
    // Predicated region
    $region22: #{tpu_custom_call.1} parent=1 // pred_check
      _
    $region23: #{tpu_custom_call.1} parent=1 // pred_check_branch
      %88 = sbr.rel (0) target = $region25
    $region24: #{tpu_custom_call.1} parent=1 // pred_region
      %89 = dma.done [#allocation4], 256
    $region25: #{tpu_custom_call.1} parent=1 // pred_fallthru
      _
    %90 = vsyncpa [#allocation3], 1
    %91 = vsyncpa [#allocation6], 1
    %92 = vsyncpa [#allocation4], 1

</llo_original>
